<compile_context>
chip_gen: v5e
topology: v5e:2x2
jax: 0.10.0
libtpu: 0.0.40
codegen_flags: <defaults>
</compile_context>

<pallas_src>
import jax
import jax.numpy as jnp
from jax import lax
from jax.experimental import pallas as pl
from jax.experimental.pallas import tpu as pltpu


# -----------------------------------------------------------------------------
# Pallas kernel
# -----------------------------------------------------------------------------
def actor_critic_kernel(
    x_ref,        # (seq, num_inputs)
    wih_ref,      # (num_inputs, 8H)  input->gates, cols [i_a,i_c,f_a,f_c,g_a,g_c,o_a,o_c]
    whh_ref,      # (2H, 8H)          hidden->gates, block-diagonal per gate
    b_ref,        # (1, 8H)           bias_ih + bias_hh, same column order
    wh_ref,       # (2H, OUT_LANES)   fused actor/critic head weights
    bh_ref,       # (1, OUT_LANES)    fused head bias
    out_ref,      # (1, OUT_LANES)    lanes [0:A] actor, lane A critic
):
    seq = x_ref.shape[0]
    h2 = whh_ref.shape[0]            # 2 * hidden  (actor || critic)

    # Hoisted input projection for BOTH chains over the whole sequence:
    # a single (seq, num_inputs) @ (num_inputs, 8H) MXU call, off the
    # serial critical path.
    xg = (
        jnp.dot(x_ref[...], wih_ref[...], preferred_element_type=jnp.float32)
        + b_ref[...]
    )                                 # (seq, 8H)

    whh = whh_ref[...]                # (2H, 8H)

    h = jnp.zeros((1, h2), jnp.float32)   # [h_a | h_c]
    c = jnp.zeros((1, h2), jnp.float32)   # [c_a | c_c]

    # Fully unrolled recurrence (seq is static and small): one vmatmul per
    # step drives both LSTM chains at once.
    for t in range(seq):
        gates = xg[t:t + 1, :] + jnp.dot(
            h, whh, preferred_element_type=jnp.float32
        )                              # (1, 8H)
        sg = jax.nn.sigmoid(gates)     # one EUP pass over all gate lanes
        tg = jnp.tanh(gates)           # one EUP pass over all gate lanes
        i_g = sg[:, 0 * h2:1 * h2]     # [i_a | i_c]
        f_g = sg[:, 1 * h2:2 * h2]     # [f_a | f_c]
        g_g = tg[:, 2 * h2:3 * h2]     # [g_a | g_c]
        o_g = sg[:, 3 * h2:4 * h2]     # [o_a | o_c]
        c = f_g * c + i_g * g_g
        h = o_g * jnp.tanh(c)

    h_t = jnp.tanh(h)                  # (1, 2H) = [tanh(h_a) | tanh(h_c)]

    # Fused actor + critic heads, single lane-dense 128-wide store.
    out_ref[...] = (
        jnp.dot(h_t, wh_ref[...], preferred_element_type=jnp.float32)
        + bh_ref[...]
    )


# -----------------------------------------------------------------------------
# One-time parameter repacking (done in the wrapper, outside the kernel).
# -----------------------------------------------------------------------------
def pack_params(params, hidden, action_space, out_lanes):
    H = hidden
    A = action_space
    f32 = jnp.float32

    def gate_split(w):  # (rows, 4H) -> 4 x (rows, H) in PyTorch order i, f, g, o
        return [w[:, k * H:(k + 1) * H] for k in range(4)]

    def interleave(a_parts, c_parts):
        cols = []
        for wa, wc in zip(a_parts, c_parts):
            cols.append(wa)
            cols.append(wc)
        return jnp.concatenate(cols, axis=1)

    # input -> gates for both chains, columns [i_a,i_c,f_a,f_c,g_a,g_c,o_a,o_c]
    wih = interleave(gate_split(params["wih_a"]), gate_split(params["wih_c"]))
    b = interleave(gate_split(params["b_a"]), gate_split(params["b_c"]))

    # hidden -> gates, block-diagonal: rows 0:H act on h_a, rows H:2H on h_c
    za = jnp.zeros((H, H), f32)
    wa = gate_split(params["whh_a"])
    wc = gate_split(params["whh_c"])
    cols = []
    for k in range(4):
        cols.append(jnp.concatenate([wa[k], za], axis=0))   # gate k, chain a
        cols.append(jnp.concatenate([za, wc[k]], axis=0))   # gate k, chain c
    whh = jnp.concatenate(cols, axis=1)                     # (2H, 8H)

    # Fused heads: lanes [0:A] = actor (from h_a rows), lane A = critic (h_c rows)
    w_heads = jnp.zeros((2 * H, out_lanes), f32)
    w_heads = w_heads.at[0:H, 0:A].set(params["w_actor"])
    w_heads = w_heads.at[H:2 * H, A:A + 1].set(params["w_critic"])
    b_heads = jnp.zeros((1, out_lanes), f32)
    b_heads = b_heads.at[:, 0:A].set(params["b_actor"])
    b_heads = b_heads.at[:, A:A + 1].set(params["b_critic"])

    return wih, whh, b, w_heads, b_heads


# -----------------------------------------------------------------------------
# Wrapper: whole arrays resident in VMEM (total footprint ~100 KB), no grid.
# -----------------------------------------------------------------------------
def actor_critic_forward(x, params):
    hidden = params["whh_a"].shape[0]
    action_space = params["w_actor"].shape[1]
    out_lanes = max(128, pl.cdiv(action_space + 1, 128) * 128)

    wih, whh, b, w_heads, b_heads = pack_params(
        params, hidden, action_space, out_lanes
    )

    vmem = pl.BlockSpec(memory_space=pltpu.MemorySpace.VMEM)
    packed = pl.pallas_call(
        actor_critic_kernel,
        out_shape=jax.ShapeDtypeStruct((1, out_lanes), jnp.float32),
        in_specs=[vmem] * 6,
        out_specs=vmem,
    )(x, wih, whh, b, w_heads, b_heads)

    actor = packed[:, :action_space]
    critic = packed[:, action_space:action_space + 1]
    return actor, critic
    # TODO(synk): on v7x the two branches could instead be sharded across the
    # 2 TensorCores with a parallel grid axis of size 2; the fused single-chain
    # form here is the right shape for the single-TC v5e/v6e.


# -----------------------------------------------------------------------------
# Deterministic parameter initialization (mirrors nn.LSTM / nn.Linear shapes).
# -----------------------------------------------------------------------------
def init_params(key, num_inputs, hidden, action_space):
    bound_lstm = 1.0 / jnp.sqrt(jnp.float32(hidden))
    keys = jax.random.split(key, 14)
    u = lambda k, shape, bnd: jax.random.uniform(
        k, shape, jnp.float32, minval=-bnd, maxval=bnd
    )

    # PyTorch stores weight_ih as (4H, in) and weight_hh as (4H, H);
    # we keep them transposed so the kernel does row-vector @ matrix.
    wih_a = u(keys[0], (num_inputs, 4 * hidden), bound_lstm)
    whh_a = u(keys[1], (hidden, 4 * hidden), bound_lstm)
    b_a = (u(keys[2], (1, 4 * hidden), bound_lstm)
           + u(keys[3], (1, 4 * hidden), bound_lstm))   # bias_ih + bias_hh

    wih_c = u(keys[4], (num_inputs, 4 * hidden), bound_lstm)
    whh_c = u(keys[5], (hidden, 4 * hidden), bound_lstm)
    b_c = (u(keys[6], (1, 4 * hidden), bound_lstm)
           + u(keys[7], (1, 4 * hidden), bound_lstm))

    bound_lin = 1.0 / jnp.sqrt(jnp.float32(hidden))
    w_actor = u(keys[8], (hidden, action_space), bound_lin)   # transposed Linear weight
    b_actor = u(keys[9], (1, action_space), bound_lin)
    w_critic = u(keys[10], (hidden, 1), bound_lin)
    b_critic = u(keys[11], (1, 1), bound_lin)

    return dict(
        wih_a=wih_a, whh_a=whh_a, b_a=b_a,
        wih_c=wih_c, whh_c=whh_c, b_c=b_c,
        w_actor=w_actor, b_actor=b_actor,
        w_critic=w_critic, b_critic=b_critic,
    )


# -----------------------------------------------------------------------------
# Pure-JAX reference (same math) for a correctness check.
# -----------------------------------------------------------------------------
def reference_forward(x, params):
    hidden = params["whh_a"].shape[0]

    def lstm_last(wih, whh, b):
        def step(carry, xt):
            h, c = carry
            g = xt @ wih + h @ whh + b[0]
            i, f, gg, o = jnp.split(g, 4)
            i = jax.nn.sigmoid(i)
            f = jax.nn.sigmoid(f)
            gg = jnp.tanh(gg)
            o = jax.nn.sigmoid(o)
            c = f * c + i * gg
            h = o * jnp.tanh(c)
            return (h, c), None

        init = (jnp.zeros(hidden, jnp.float32), jnp.zeros(hidden, jnp.float32))
        (h, _), _ = lax.scan(step, init, x)
        return h

    h_a = jnp.tanh(lstm_last(params["wih_a"], params["whh_a"], params["b_a"]))
    h_c = jnp.tanh(lstm_last(params["wih_c"], params["whh_c"], params["b_c"]))
    actor = h_a @ params["w_actor"] + params["b_actor"][0]
    critic = h_c @ params["w_critic"] + params["b_critic"][0]
    return actor[None, :], critic[None, :]


if __name__ == "__main__":
    SEQ = 8
    NUM_INPUTS = 16
    HIDDEN = 32
    ACTION_SPACE = 4

    key = jax.random.PRNGKey(0)
    k_x, k_p = jax.random.split(key)
    # Corresponds to PyTorch `inputs` of shape (seq, num_inputs) -> view(seq, 1, -1)
    x = jax.random.normal(k_x, (SEQ, NUM_INPUTS), jnp.float32)
    params = init_params(k_p, NUM_INPUTS, HIDDEN, ACTION_SPACE)

    actor_out, critic_out = actor_critic_forward(x, params)
    jax.block_until_ready((actor_out, critic_out))

    ref_actor, ref_critic = reference_forward(x, params)
    assert actor_out.shape == (1, ACTION_SPACE)
    assert critic_out.shape == (1, 1)
    assert jnp.allclose(actor_out, ref_actor, atol=1e-4, rtol=1e-4)
    assert jnp.allclose(critic_out, ref_critic, atol=1e-4, rtol=1e-4)

    print("KERNEL_OK")
</pallas_src>

<mosaic_0001>
module attributes {stable_mosaic.version = 11 : i64} {
  func.func @actor_critic_kernel(%arg0: memref<8x16xf32, #tpu.memory_space<vmem>>, %arg1: memref<16x256xf32, #tpu.memory_space<vmem>>, %arg2: memref<64x256xf32, #tpu.memory_space<vmem>>, %arg3: memref<1x256xf32, #tpu.memory_space<vmem>>, %arg4: memref<64x128xf32, #tpu.memory_space<vmem>>, %arg5: memref<1x128xf32, #tpu.memory_space<vmem>>, %arg6: memref<1x128xf32, #tpu.memory_space<vmem>>) attributes {dimension_semantics = [], scalar_prefetch = 0 : i64, scratch_operands = 0 : i64, tpu.core_type = #tpu.core_type<tc>} {
    %c0 = arith.constant 0 : index
    %c0_0 = arith.constant 0 : index
    %0 = vector.load %arg0[%c0, %c0_0] : memref<8x16xf32, #tpu.memory_space<vmem>>, vector<8x16xf32>
    %c0_1 = arith.constant 0 : index
    %c0_2 = arith.constant 0 : index
    %1 = vector.load %arg1[%c0_1, %c0_2] : memref<16x256xf32, #tpu.memory_space<vmem>>, vector<16x256xf32>
    %cst = arith.constant dense<0.000000e+00> : vector<8x256xf32>
    %2 = tpu.matmul %0, %1, %cst {dimension_numbers = #tpu.dot_dimension_numbers<[1], [0], [0], [1], [0, 0, 1, 1], [], []>} : vector<8x16xf32>, vector<16x256xf32>, vector<8x256xf32> -> vector<8x256xf32>
    %c0_3 = arith.constant 0 : index
    %c0_4 = arith.constant 0 : index
    %3 = vector.load %arg3[%c0_3, %c0_4] : memref<1x256xf32, #tpu.memory_space<vmem>>, vector<1x256xf32>
    %4 = vector.broadcast %3 : vector<1x256xf32> to vector<8x256xf32>
    %5 = arith.addf %2, %4 : vector<8x256xf32>
    %c0_5 = arith.constant 0 : index
    %c0_6 = arith.constant 0 : index
    %6 = vector.load %arg2[%c0_5, %c0_6] : memref<64x256xf32, #tpu.memory_space<vmem>>, vector<64x256xf32>
    %cst_7 = arith.constant 0.000000e+00 : f32
    %7 = vector.broadcast %cst_7 : f32 to vector<1x64xf32>
    %cst_8 = arith.constant 0.000000e+00 : f32
    %8 = vector.broadcast %cst_8 : f32 to vector<1x64xf32>
    %9 = vector.extract_strided_slice %5 {offsets = [0, 0], sizes = [1, 256], strides = [1, 1]} : vector<8x256xf32> to vector<1x256xf32>
    %cst_9 = arith.constant dense<0.000000e+00> : vector<1x256xf32>
    %10 = tpu.matmul %7, %6, %cst_9 {dimension_numbers = #tpu.dot_dimension_numbers<[1], [0], [0], [1], [0, 0, 1, 1], [], []>} : vector<1x64xf32>, vector<64x256xf32>, vector<1x256xf32> -> vector<1x256xf32>
    %11 = arith.addf %9, %10 : vector<1x256xf32>
    %12 = arith.negf %11 : vector<1x256xf32>
    %13 = math.exp %12 : vector<1x256xf32>
    %cst_10 = arith.constant 1.000000e+00 : f32
    %14 = vector.broadcast %cst_10 : f32 to vector<1x256xf32>
    %15 = arith.addf %14, %13 : vector<1x256xf32>
    %16 = arith.divf %14, %15 : vector<1x256xf32>
    %17 = math.tanh %11 : vector<1x256xf32>
    %18 = vector.extract_strided_slice %16 {offsets = [0, 0], sizes = [1, 64], strides = [1, 1]} : vector<1x256xf32> to vector<1x64xf32>
    %19 = vector.extract_strided_slice %16 {offsets = [0, 64], sizes = [1, 64], strides = [1, 1]} : vector<1x256xf32> to vector<1x64xf32>
    %20 = vector.extract_strided_slice %17 {offsets = [0, 128], sizes = [1, 64], strides = [1, 1]} : vector<1x256xf32> to vector<1x64xf32>
    %21 = vector.extract_strided_slice %16 {offsets = [0, 192], sizes = [1, 64], strides = [1, 1]} : vector<1x256xf32> to vector<1x64xf32>
    %22 = arith.mulf %19, %8 : vector<1x64xf32>
    %23 = arith.mulf %18, %20 : vector<1x64xf32>
    %24 = arith.addf %22, %23 : vector<1x64xf32>
    %25 = math.tanh %24 : vector<1x64xf32>
    %26 = arith.mulf %21, %25 : vector<1x64xf32>
    %27 = vector.extract_strided_slice %5 {offsets = [1, 0], sizes = [1, 256], strides = [1, 1]} : vector<8x256xf32> to vector<1x256xf32>
    %cst_11 = arith.constant dense<0.000000e+00> : vector<1x256xf32>
    %28 = tpu.matmul %26, %6, %cst_11 {dimension_numbers = #tpu.dot_dimension_numbers<[1], [0], [0], [1], [0, 0, 1, 1], [], []>} : vector<1x64xf32>, vector<64x256xf32>, vector<1x256xf32> -> vector<1x256xf32>
    %29 = arith.addf %27, %28 : vector<1x256xf32>
    %30 = arith.negf %29 : vector<1x256xf32>
    %31 = math.exp %30 : vector<1x256xf32>
    %cst_12 = arith.constant 1.000000e+00 : f32
    %32 = vector.broadcast %cst_12 : f32 to vector<1x256xf32>
    %33 = arith.addf %32, %31 : vector<1x256xf32>
    %34 = arith.divf %32, %33 : vector<1x256xf32>
    %35 = math.tanh %29 : vector<1x256xf32>
    %36 = vector.extract_strided_slice %34 {offsets = [0, 0], sizes = [1, 64], strides = [1, 1]} : vector<1x256xf32> to vector<1x64xf32>
    %37 = vector.extract_strided_slice %34 {offsets = [0, 64], sizes = [1, 64], strides = [1, 1]} : vector<1x256xf32> to vector<1x64xf32>
    %38 = vector.extract_strided_slice %35 {offsets = [0, 128], sizes = [1, 64], strides = [1, 1]} : vector<1x256xf32> to vector<1x64xf32>
    %39 = vector.extract_strided_slice %34 {offsets = [0, 192], sizes = [1, 64], strides = [1, 1]} : vector<1x256xf32> to vector<1x64xf32>
    %40 = arith.mulf %37, %24 : vector<1x64xf32>
    %41 = arith.mulf %36, %38 : vector<1x64xf32>
    %42 = arith.addf %40, %41 : vector<1x64xf32>
    %43 = math.tanh %42 : vector<1x64xf32>
    %44 = arith.mulf %39, %43 : vector<1x64xf32>
    %45 = vector.extract_strided_slice %5 {offsets = [2, 0], sizes = [1, 256], strides = [1, 1]} : vector<8x256xf32> to vector<1x256xf32>
    %cst_13 = arith.constant dense<0.000000e+00> : vector<1x256xf32>
    %46 = tpu.matmul %44, %6, %cst_13 {dimension_numbers = #tpu.dot_dimension_numbers<[1], [0], [0], [1], [0, 0, 1, 1], [], []>} : vector<1x64xf32>, vector<64x256xf32>, vector<1x256xf32> -> vector<1x256xf32>
    %47 = arith.addf %45, %46 : vector<1x256xf32>
    %48 = arith.negf %47 : vector<1x256xf32>
    %49 = math.exp %48 : vector<1x256xf32>
    %cst_14 = arith.constant 1.000000e+00 : f32
    %50 = vector.broadcast %cst_14 : f32 to vector<1x256xf32>
    %51 = arith.addf %50, %49 : vector<1x256xf32>
    %52 = arith.divf %50, %51 : vector<1x256xf32>
    %53 = math.tanh %47 : vector<1x256xf32>
    %54 = vector.extract_strided_slice %52 {offsets = [0, 0], sizes = [1, 64], strides = [1, 1]} : vector<1x256xf32> to vector<1x64xf32>
    %55 = vector.extract_strided_slice %52 {offsets = [0, 64], sizes = [1, 64], strides = [1, 1]} : vector<1x256xf32> to vector<1x64xf32>
    %56 = vector.extract_strided_slice %53 {offsets = [0, 128], sizes = [1, 64], strides = [1, 1]} : vector<1x256xf32> to vector<1x64xf32>
    %57 = vector.extract_strided_slice %52 {offsets = [0, 192], sizes = [1, 64], strides = [1, 1]} : vector<1x256xf32> to vector<1x64xf32>
    %58 = arith.mulf %55, %42 : vector<1x64xf32>
    %59 = arith.mulf %54, %56 : vector<1x64xf32>
    %60 = arith.addf %58, %59 : vector<1x64xf32>
    %61 = math.tanh %60 : vector<1x64xf32>
    %62 = arith.mulf %57, %61 : vector<1x64xf32>
    %63 = vector.extract_strided_slice %5 {offsets = [3, 0], sizes = [1, 256], strides = [1, 1]} : vector<8x256xf32> to vector<1x256xf32>
    %cst_15 = arith.constant dense<0.000000e+00> : vector<1x256xf32>
    %64 = tpu.matmul %62, %6, %cst_15 {dimension_numbers = #tpu.dot_dimension_numbers<[1], [0], [0], [1], [0, 0, 1, 1], [], []>} : vector<1x64xf32>, vector<64x256xf32>, vector<1x256xf32> -> vector<1x256xf32>
    %65 = arith.addf %63, %64 : vector<1x256xf32>
    %66 = arith.negf %65 : vector<1x256xf32>
    %67 = math.exp %66 : vector<1x256xf32>
    %cst_16 = arith.constant 1.000000e+00 : f32
    %68 = vector.broadcast %cst_16 : f32 to vector<1x256xf32>
    %69 = arith.addf %68, %67 : vector<1x256xf32>
    %70 = arith.divf %68, %69 : vector<1x256xf32>
    %71 = math.tanh %65 : vector<1x256xf32>
    %72 = vector.extract_strided_slice %70 {offsets = [0, 0], sizes = [1, 64], strides = [1, 1]} : vector<1x256xf32> to vector<1x64xf32>
    %73 = vector.extract_strided_slice %70 {offsets = [0, 64], sizes = [1, 64], strides = [1, 1]} : vector<1x256xf32> to vector<1x64xf32>
    %74 = vector.extract_strided_slice %71 {offsets = [0, 128], sizes = [1, 64], strides = [1, 1]} : vector<1x256xf32> to vector<1x64xf32>
    %75 = vector.extract_strided_slice %70 {offsets = [0, 192], sizes = [1, 64], strides = [1, 1]} : vector<1x256xf32> to vector<1x64xf32>
    %76 = arith.mulf %73, %60 : vector<1x64xf32>
    %77 = arith.mulf %72, %74 : vector<1x64xf32>
    %78 = arith.addf %76, %77 : vector<1x64xf32>
    %79 = math.tanh %78 : vector<1x64xf32>
    %80 = arith.mulf %75, %79 : vector<1x64xf32>
    %81 = vector.extract_strided_slice %5 {offsets = [4, 0], sizes = [1, 256], strides = [1, 1]} : vector<8x256xf32> to vector<1x256xf32>
    %cst_17 = arith.constant dense<0.000000e+00> : vector<1x256xf32>
    %82 = tpu.matmul %80, %6, %cst_17 {dimension_numbers = #tpu.dot_dimension_numbers<[1], [0], [0], [1], [0, 0, 1, 1], [], []>} : vector<1x64xf32>, vector<64x256xf32>, vector<1x256xf32> -> vector<1x256xf32>
    %83 = arith.addf %81, %82 : vector<1x256xf32>
    %84 = arith.negf %83 : vector<1x256xf32>
    %85 = math.exp %84 : vector<1x256xf32>
    %cst_18 = arith.constant 1.000000e+00 : f32
    %86 = vector.broadcast %cst_18 : f32 to vector<1x256xf32>
    %87 = arith.addf %86, %85 : vector<1x256xf32>
    %88 = arith.divf %86, %87 : vector<1x256xf32>
    %89 = math.tanh %83 : vector<1x256xf32>
    %90 = vector.extract_strided_slice %88 {offsets = [0, 0], sizes = [1, 64], strides = [1, 1]} : vector<1x256xf32> to vector<1x64xf32>
    %91 = vector.extract_strided_slice %88 {offsets = [0, 64], sizes = [1, 64], strides = [1, 1]} : vector<1x256xf32> to vector<1x64xf32>
    %92 = vector.extract_strided_slice %89 {offsets = [0, 128], sizes = [1, 64], strides = [1, 1]} : vector<1x256xf32> to vector<1x64xf32>
    %93 = vector.extract_strided_slice %88 {offsets = [0, 192], sizes = [1, 64], strides = [1, 1]} : vector<1x256xf32> to vector<1x64xf32>
    %94 = arith.mulf %91, %78 : vector<1x64xf32>
    %95 = arith.mulf %90, %92 : vector<1x64xf32>
    %96 = arith.addf %94, %95 : vector<1x64xf32>
    %97 = math.tanh %96 : vector<1x64xf32>
    %98 = arith.mulf %93, %97 : vector<1x64xf32>
    %99 = vector.extract_strided_slice %5 {offsets = [5, 0], sizes = [1, 256], strides = [1, 1]} : vector<8x256xf32> to vector<1x256xf32>
    %cst_19 = arith.constant dense<0.000000e+00> : vector<1x256xf32>
    %100 = tpu.matmul %98, %6, %cst_19 {dimension_numbers = #tpu.dot_dimension_numbers<[1], [0], [0], [1], [0, 0, 1, 1], [], []>} : vector<1x64xf32>, vector<64x256xf32>, vector<1x256xf32> -> vector<1x256xf32>
    %101 = arith.addf %99, %100 : vector<1x256xf32>
    %102 = arith.negf %101 : vector<1x256xf32>
    %103 = math.exp %102 : vector<1x256xf32>
    %cst_20 = arith.constant 1.000000e+00 : f32
    %104 = vector.broadcast %cst_20 : f32 to vector<1x256xf32>
    %105 = arith.addf %104, %103 : vector<1x256xf32>
    %106 = arith.divf %104, %105 : vector<1x256xf32>
    %107 = math.tanh %101 : vector<1x256xf32>
    %108 = vector.extract_strided_slice %106 {offsets = [0, 0], sizes = [1, 64], strides = [1, 1]} : vector<1x256xf32> to vector<1x64xf32>
    %109 = vector.extract_strided_slice %106 {offsets = [0, 64], sizes = [1, 64], strides = [1, 1]} : vector<1x256xf32> to vector<1x64xf32>
    %110 = vector.extract_strided_slice %107 {offsets = [0, 128], sizes = [1, 64], strides = [1, 1]} : vector<1x256xf32> to vector<1x64xf32>
    %111 = vector.extract_strided_slice %106 {offsets = [0, 192], sizes = [1, 64], strides = [1, 1]} : vector<1x256xf32> to vector<1x64xf32>
    %112 = arith.mulf %109, %96 : vector<1x64xf32>
    %113 = arith.mulf %108, %110 : vector<1x64xf32>
    %114 = arith.addf %112, %113 : vector<1x64xf32>
    %115 = math.tanh %114 : vector<1x64xf32>
    %116 = arith.mulf %111, %115 : vector<1x64xf32>
    %117 = vector.extract_strided_slice %5 {offsets = [6, 0], sizes = [1, 256], strides = [1, 1]} : vector<8x256xf32> to vector<1x256xf32>
    %cst_21 = arith.constant dense<0.000000e+00> : vector<1x256xf32>
    %118 = tpu.matmul %116, %6, %cst_21 {dimension_numbers = #tpu.dot_dimension_numbers<[1], [0], [0], [1], [0, 0, 1, 1], [], []>} : vector<1x64xf32>, vector<64x256xf32>, vector<1x256xf32> -> vector<1x256xf32>
    %119 = arith.addf %117, %118 : vector<1x256xf32>
    %120 = arith.negf %119 : vector<1x256xf32>
    %121 = math.exp %120 : vector<1x256xf32>
    %cst_22 = arith.constant 1.000000e+00 : f32
    %122 = vector.broadcast %cst_22 : f32 to vector<1x256xf32>
    %123 = arith.addf %122, %121 : vector<1x256xf32>
    %124 = arith.divf %122, %123 : vector<1x256xf32>
    %125 = math.tanh %119 : vector<1x256xf32>
    %126 = vector.extract_strided_slice %124 {offsets = [0, 0], sizes = [1, 64], strides = [1, 1]} : vector<1x256xf32> to vector<1x64xf32>
    %127 = vector.extract_strided_slice %124 {offsets = [0, 64], sizes = [1, 64], strides = [1, 1]} : vector<1x256xf32> to vector<1x64xf32>
    %128 = vector.extract_strided_slice %125 {offsets = [0, 128], sizes = [1, 64], strides = [1, 1]} : vector<1x256xf32> to vector<1x64xf32>
    %129 = vector.extract_strided_slice %124 {offsets = [0, 192], sizes = [1, 64], strides = [1, 1]} : vector<1x256xf32> to vector<1x64xf32>
    %130 = arith.mulf %127, %114 : vector<1x64xf32>
    %131 = arith.mulf %126, %128 : vector<1x64xf32>
    %132 = arith.addf %130, %131 : vector<1x64xf32>
    %133 = math.tanh %132 : vector<1x64xf32>
    %134 = arith.mulf %129, %133 : vector<1x64xf32>
    %135 = vector.extract_strided_slice %5 {offsets = [7, 0], sizes = [1, 256], strides = [1, 1]} : vector<8x256xf32> to vector<1x256xf32>
    %cst_23 = arith.constant dense<0.000000e+00> : vector<1x256xf32>
    %136 = tpu.matmul %134, %6, %cst_23 {dimension_numbers = #tpu.dot_dimension_numbers<[1], [0], [0], [1], [0, 0, 1, 1], [], []>} : vector<1x64xf32>, vector<64x256xf32>, vector<1x256xf32> -> vector<1x256xf32>
    %137 = arith.addf %135, %136 : vector<1x256xf32>
    %138 = arith.negf %137 : vector<1x256xf32>
    %139 = math.exp %138 : vector<1x256xf32>
    %cst_24 = arith.constant 1.000000e+00 : f32
    %140 = vector.broadcast %cst_24 : f32 to vector<1x256xf32>
    %141 = arith.addf %140, %139 : vector<1x256xf32>
    %142 = arith.divf %140, %141 : vector<1x256xf32>
    %143 = math.tanh %137 : vector<1x256xf32>
    %144 = vector.extract_strided_slice %142 {offsets = [0, 0], sizes = [1, 64], strides = [1, 1]} : vector<1x256xf32> to vector<1x64xf32>
    %145 = vector.extract_strided_slice %142 {offsets = [0, 64], sizes = [1, 64], strides = [1, 1]} : vector<1x256xf32> to vector<1x64xf32>
    %146 = vector.extract_strided_slice %143 {offsets = [0, 128], sizes = [1, 64], strides = [1, 1]} : vector<1x256xf32> to vector<1x64xf32>
    %147 = vector.extract_strided_slice %142 {offsets = [0, 192], sizes = [1, 64], strides = [1, 1]} : vector<1x256xf32> to vector<1x64xf32>
    %148 = arith.mulf %145, %132 : vector<1x64xf32>
    %149 = arith.mulf %144, %146 : vector<1x64xf32>
    %150 = arith.addf %148, %149 : vector<1x64xf32>
    %151 = math.tanh %150 : vector<1x64xf32>
    %152 = arith.mulf %147, %151 : vector<1x64xf32>
    %153 = math.tanh %152 : vector<1x64xf32>
    %c0_25 = arith.constant 0 : index
    %c0_26 = arith.constant 0 : index
    %154 = vector.load %arg4[%c0_25, %c0_26] : memref<64x128xf32, #tpu.memory_space<vmem>>, vector<64x128xf32>
    %cst_27 = arith.constant dense<0.000000e+00> : vector<1x128xf32>
    %155 = tpu.matmul %153, %154, %cst_27 {dimension_numbers = #tpu.dot_dimension_numbers<[1], [0], [0], [1], [0, 0, 1, 1], [], []>} : vector<1x64xf32>, vector<64x128xf32>, vector<1x128xf32> -> vector<1x128xf32>
    %c0_28 = arith.constant 0 : index
    %c0_29 = arith.constant 0 : index
    %156 = vector.load %arg5[%c0_28, %c0_29] : memref<1x128xf32, #tpu.memory_space<vmem>>, vector<1x128xf32>
    %157 = arith.addf %155, %156 : vector<1x128xf32>
    %c0_30 = arith.constant 0 : index
    %c0_31 = arith.constant 0 : index
    %158 = vector.load %arg6[%c0_30, %c0_31] : memref<1x128xf32, #tpu.memory_space<vmem>>, vector<1x128xf32>
    tpu.vector_store %arg6[%c0_30, %c0_31], %157 {strides = array<i32>} : memref<1x128xf32, #tpu.memory_space<vmem>>, vector<1x128xf32>,
    return
  }
}

</mosaic_0001>

<llo_original>
// kernel: tpu_custom_call.1
$region0: #{tpu_custom_call.1}
  #allocation0 [shape = 'u32[]', space=smem, size = 0x4, offset = 0x4, fixed_abs, tag = 'smem constant byte address 0x4 - core index']
  #allocation1 [shape = 'u32[72,128]{1,0:T(1,128)}', space=vmem, size = 0x9000, scoped, tag = 'internal scratch']
  %s0 = inlined_call_operand.hbm [shape: f32[8,16], index: 0, kind: input, shape index: {}]
  %s1 = inlined_call_operand.hbm [shape: f32[16,256], index: 1, kind: input, shape index: {}]
  %s2 = inlined_call_operand.hbm [shape: f32[64,256], index: 2, kind: input, shape index: {}]
  %s3 = inlined_call_operand.vmem [shape: f32[1,256], index: 3, kind: input, shape index: {}]
  %s4 = inlined_call_operand.hbm [shape: f32[64,128], index: 4, kind: input, shape index: {}]
  %s5 = inlined_call_operand.vmem [shape: f32[1,128], index: 5, kind: input, shape index: {}]
  %s6 = inlined_call_operand.hbm [shape: f32[1,128], index: 6, kind: output, shape index: {}]
  %s7 = sld [smem:[#allocation0]]
  $region50: #{tpu_custom_call.1} parent=0
    _
  %s9 = ssub.s32 1, %s7
  %s10 = scalar_select 0, %s9, %s7
  $region1: #{tpu_custom_call.1} parent=0
    #allocation2 [shape = 'u8[4096]{0}', space=vmem, size = 0x1000, scoped, tag = 'input window, operand 0, single buffered']
    #allocation3 [shape = 's32[1]{0}', space=sflag, size = 0x4, scoped, tag = 'scoped memory for tpu_custom_call.1']
    #allocation4 [shape = 's32[1]{0}', space=sflag, size = 0x4, scoped, tag = 'scoped memory for tpu_custom_call.1']
    #allocation5 [shape = 'u8[16384]{0}', space=vmem, size = 0x4000, scoped, tag = 'input window, operand 1, single buffered']
    #allocation6 [shape = 's32[1]{0}', space=sflag, size = 0x4, scoped, tag = 'scoped memory for tpu_custom_call.1']
    #allocation7 [shape = 'u8[65536]{0}', space=vmem, size = 0x10000, scoped, tag = 'input window, operand 2, single buffered']
    #allocation8 [shape = 'u8[32768]{0}', space=vmem, size = 0x8000, scoped, tag = 'input window, operand 4, single buffered']
    #allocation9 [shape = 's32[1]{0}', space=sflag, size = 0x4, scoped, tag = 'scoped memory for tpu_custom_call.1']
    #allocation10 [shape = 'u8[512]{0}', space=vmem, size = 0x400, scoped, tag = 'output window, operand 0, single buffered']
    %11 = vsyncpa [#allocation3], 0
    %12 = vsyncpa [#allocation6], 0
    %13 = vsyncpa [#allocation9], 0
    %14 = vsyncpa [#allocation4], 0
    // Predicated region
    $region2: #{tpu_custom_call.1} parent=1 // pred_check
      _
    $region3: #{tpu_custom_call.1} parent=1 // pred_check_branch
      %16 = sbr.rel (0) target = $region5
    $region4: #{tpu_custom_call.1} parent=1 // pred_region
      %18 = vsyncadd [#allocation3], 0
      %s20 = sshll.u32 %s0, 4
      %s21 = int_to_ptr.hbm [resolvable:$true] %s20
      %s22 = sshll.u32 [#allocation2], 4
      %s23 = int_to_ptr.vmem [resolvable:$true] %s22
      %25 = dma.hbm_to_vmem [thread:$0]  %s21, 128, %s23, [#allocation3]
    $region5: #{tpu_custom_call.1} parent=1 // pred_fallthru
      _
    // Predicated region
    $region6: #{tpu_custom_call.1} parent=1 // pred_check
      _
    $region7: #{tpu_custom_call.1} parent=1 // pred_check_branch
      %27 = sbr.rel (0) target = $region9
    $region8: #{tpu_custom_call.1} parent=1 // pred_region
      %29 = vsyncadd [#allocation6], 0
      %s30 = sshll.u32 %s1, 4
      %s31 = int_to_ptr.hbm [resolvable:$true] %s30
      %s32 = sshll.u32 [#allocation5], 4
      %s33 = int_to_ptr.vmem [resolvable:$true] %s32
      %38 = dma.hbm_to_vmem [thread:$0]  %s31, 512, %s33, [#allocation6], 256, 256, 16
    $region9: #{tpu_custom_call.1} parent=1 // pred_fallthru
      _
    // Predicated region
    $region10: #{tpu_custom_call.1} parent=1 // pred_check
      _
    $region11: #{tpu_custom_call.1} parent=1 // pred_check_branch
      %40 = sbr.rel (0) target = $region13
    $region12: #{tpu_custom_call.1} parent=1 // pred_region
      %42 = vsyncadd [#allocation6], 0
      %s43 = sshll.u32 %s2, 4
      %s44 = int_to_ptr.hbm [resolvable:$true] %s43
      %s45 = sshll.u32 [#allocation7], 4
      %s46 = int_to_ptr.vmem [resolvable:$true] %s45
      %51 = dma.hbm_to_vmem [thread:$0]  %s44, 2048, %s46, [#allocation6], 256, 256, 16
    $region13: #{tpu_custom_call.1} parent=1 // pred_fallthru
      _
    // Predicated region
    $region14: #{tpu_custom_call.1} parent=1 // pred_check
      _
    $region15: #{tpu_custom_call.1} parent=1 // pred_check_branch
      %53 = sbr.rel (0) target = $region17
    $region16: #{tpu_custom_call.1} parent=1 // pred_region
      _
    $region17: #{tpu_custom_call.1} parent=1 // pred_fallthru
      _
    // Predicated region
    $region18: #{tpu_custom_call.1} parent=1 // pred_check
      _
    $region19: #{tpu_custom_call.1} parent=1 // pred_check_branch
      %55 = sbr.rel (0) target = $region21
    $region20: #{tpu_custom_call.1} parent=1 // pred_region
      %57 = vsyncadd [#allocation9], 0
      %s58 = sshll.u32 %s4, 4
      %s59 = int_to_ptr.hbm [resolvable:$true] %s58
      %s60 = sshll.u32 [#allocation8], 4
      %s61 = int_to_ptr.vmem [resolvable:$true] %s60
      %66 = dma.hbm_to_vmem [thread:$0]  %s59, 1024, %s61, [#allocation9], 128, 128, 8
    $region21: #{tpu_custom_call.1} parent=1 // pred_fallthru
      _
    // Predicated region
    $region22: #{tpu_custom_call.1} parent=1 // pred_check
      _
    $region23: #{tpu_custom_call.1} parent=1 // pred_check_branch
      %68 = sbr.rel (0) target = $region25
    $region24: #{tpu_custom_call.1} parent=1 // pred_region
      _
    $region25: #{tpu_custom_call.1} parent=1 // pred_fallthru
      _
    // Predicated region
    $region26: #{tpu_custom_call.1} parent=1 // pred_check
      _
    $region27: #{tpu_custom_call.1} parent=1 // pred_check_branch
      %70 = sbr.rel (0) target = $region29
    $region28: #{tpu_custom_call.1} parent=1 // pred_region
      %72 = dma.done [#allocation3], 128
    $region29: #{tpu_custom_call.1} parent=1 // pred_fallthru
      _
    // Predicated region
    $region30: #{tpu_custom_call.1} parent=1 // pred_check
      _
    $region31: #{tpu_custom_call.1} parent=1 // pred_check_branch
      %74 = sbr.rel (0) target = $region33
    $region32: #{tpu_custom_call.1} parent=1 // pred_region
      %76 = dma.done [#allocation6], 512
    $region33: #{tpu_custom_call.1} parent=1 // pred_fallthru
      _
    // Predicated region
    $region34: #{tpu_custom_call.1} parent=1 // pred_check
      _
    $region35: #{tpu_custom_call.1} parent=1 // pred_check_branch
      %78 = sbr.rel (0) target = $region37
    $region36: #{tpu_custom_call.1} parent=1 // pred_region
      %80 = dma.done [#allocation6], 2048
    $region37: #{tpu_custom_call.1} parent=1 // pred_fallthru
      _
    // Predicated region
    $region38: #{tpu_custom_call.1} parent=1 // pred_check
      _
    $region39: #{tpu_custom_call.1} parent=1 // pred_check_branch
      %82 = sbr.rel (0) target = $region41
    $region40: #{tpu_custom_call.1} parent=1 // pred_region
      %84 = dma.done [#allocation9], 1024
    $region41: #{tpu_custom_call.1} parent=1 // pred_fallthru
      _
    %v85 = vld [vmem:[#allocation2] sm:$0xff]
    %v86 = vld [vmem:[#allocation5] sm:$0xff]
    %v87 = vld [vmem:[#allocation5 + $0x8] sm:$0xff]
    %v88 = vld [vmem:[#allocation5 + $0x10] sm:$0xff]
    %v89 = vld [vmem:[#allocation5 + $0x18] sm:$0xff]
    %v90 = vld [vmem:[%s3] sm:$0x3]
    %v92 = vperm.slane %v90, 0
    %v93 = vperm.slane %v90, 1
    %vm96 = vcmask 130048
    %v98 = vsel %vm96, %v85, 0
    %100 = vmatpush.msra.mxu0 0.0
    %101 = vmatpush.msra.mxu0 0.0
    %102 = vmatpush.msra.mxu0 0.0
    %103 = vmatpush.msra.mxu0 0.0
    %104 = vmatpush.msra.mxu0 0.0
    %105 = vmatpush.msra.mxu0 0.0
    %106 = vmatpush.msra.mxu0 0.0
    %107 = vmatpush.msra.mxu0 0.0
    %108 = vmatpush.msra.mxu0 0.0
    %109 = vmatpush.msra.mxu0 0.0
    %110 = vmatpush.msra.mxu0 0.0
    %111 = vmatpush.msra.mxu0 0.0
    %112 = vmatpush.msra.mxu0 0.0
    %113 = vmatpush.msra.mxu0 0.0
    %114 = vmatpush.msra.mxu0 %v88
    %115 = vmatpush.msra.mxu0 %v86
    %116 = vmatmul.f32.gmra.mxu0 %v98
    %v117 = vpop.f32.mrf.mxu0
    %v118 = vadd.f32 %v92, %v117
    %119 = vdwg.mxu0
    %120 = vmatpush.msra.mxu0 0.0
    %121 = vmatpush.msra.mxu0 0.0
    %122 = vmatpush.msra.mxu0 0.0
    %123 = vmatpush.msra.mxu0 0.0
    %124 = vmatpush.msra.mxu0 0.0
    %125 = vmatpush.msra.mxu0 0.0
    %126 = vmatpush.msra.mxu0 0.0
    %127 = vmatpush.msra.mxu0 0.0
    %128 = vmatpush.msra.mxu0 0.0
    %129 = vmatpush.msra.mxu0 0.0
    %130 = vmatpush.msra.mxu0 0.0
    %131 = vmatpush.msra.mxu0 0.0
    %132 = vmatpush.msra.mxu0 0.0
    %133 = vmatpush.msra.mxu0 0.0
    %134 = vmatpush.msra.mxu0 %v89
    %135 = vmatpush.msra.mxu0 %v87
    %136 = vmatmul.f32.gmra.mxu0 %v98
    %v137 = vpop.f32.mrf.mxu0
    %v138 = vadd.f32 %v93, %v137
    %139 = vdwg.mxu0
    %v140 = vld [vmem:[#allocation7] sm:$0xff]
    %v141 = vld [vmem:[#allocation7 + $0x8] sm:$0xff]
    %v142 = vld [vmem:[#allocation7 + $0x10] sm:$0xff]
    %v143 = vld [vmem:[#allocation7 + $0x18] sm:$0xff]
    %v144 = vld [vmem:[#allocation7 + $0x20] sm:$0xff]
    %v145 = vld [vmem:[#allocation7 + $0x28] sm:$0xff]
    %v146 = vld [vmem:[#allocation7 + $0x30] sm:$0xff]
    %v147 = vld [vmem:[#allocation7 + $0x38] sm:$0xff]
    %v148 = vld [vmem:[#allocation7 + $0x40] sm:$0xff]
    %v149 = vld [vmem:[#allocation7 + $0x48] sm:$0xff]
    %v150 = vld [vmem:[#allocation7 + $0x50] sm:$0xff]
    %v151 = vld [vmem:[#allocation7 + $0x58] sm:$0xff]
    %v152 = vld [vmem:[#allocation7 + $0x60] sm:$0xff]
    %v153 = vld [vmem:[#allocation7 + $0x68] sm:$0xff]
    %v154 = vld [vmem:[#allocation7 + $0x70] sm:$0xff]
    %v155 = vld [vmem:[#allocation7 + $0x78] sm:$0xff]
    %vm156 = vcmask 523264
    %v158 = vsel %vm156, 0.0, 0
    %160 = vmatpush.msra.mxu0 0.0
    %161 = vmatpush.msra.mxu0 0.0
    %162 = vmatpush.msra.mxu0 0.0
    %163 = vmatpush.msra.mxu0 0.0
    %164 = vmatpush.msra.mxu0 0.0
    %165 = vmatpush.msra.mxu0 0.0
    %166 = vmatpush.msra.mxu0 0.0
    %167 = vmatpush.msra.mxu0 0.0
    %168 = vmatpush.msra.mxu0 %v154
    %169 = vmatpush.msra.mxu0 %v152
    %170 = vmatpush.msra.mxu0 %v150
    %171 = vmatpush.msra.mxu0 %v148
    %172 = vmatpush.msra.mxu0 %v146
    %173 = vmatpush.msra.mxu0 %v144
    %174 = vmatpush.msra.mxu0 %v142
    %175 = vmatpush.msra.mxu0 %v140
    %176 = vmatmul.f32.gmra.mxu0 %v158
    %v177 = vpop.f32.mrf.mxu0
    %v178 = vadd.f32 0.0, %v177
    %179 = vdwg.mxu0
    %180 = vmatpush.msra.mxu0 0.0
    %181 = vmatpush.msra.mxu0 0.0
    %182 = vmatpush.msra.mxu0 0.0
    %183 = vmatpush.msra.mxu0 0.0
    %184 = vmatpush.msra.mxu0 0.0
    %185 = vmatpush.msra.mxu0 0.0
    %186 = vmatpush.msra.mxu0 0.0
    %187 = vmatpush.msra.mxu0 0.0
    %188 = vmatpush.msra.mxu0 %v155
    %189 = vmatpush.msra.mxu0 %v153
    %190 = vmatpush.msra.mxu0 %v151
    %191 = vmatpush.msra.mxu0 %v149
    %192 = vmatpush.msra.mxu0 %v147
    %193 = vmatpush.msra.mxu0 %v145
    %194 = vmatpush.msra.mxu0 %v143
    %195 = vmatpush.msra.mxu0 %v141
    %196 = vmatmul.f32.gmra.mxu0 %v158
    %v197 = vpop.f32.mrf.mxu0
    %v198 = vadd.f32 0.0, %v197
    %199 = vdwg.mxu0
    %v200 = vadd.f32 %v118, %v178
    %v201 = vadd.f32 %v138, %v198
    %v202 = vxor.u32 %v200, 2147483648
    %v203 = vxor.u32 %v201, 2147483648
    %v204 = vmul.f32 %v202, 1.442695
    %v205 = vpow.pop %v204
    %v206 = vmul.f32 %v203, 1.442695
    %v207 = vpow.pop %v206
    %v208 = vadd.f32 %v205, 1.0
    %v209 = vadd.f32 %v207, 1.0
    %v210 = vrcp.pop %v208
    %v211 = vmul.f32 %v208, %v210
    %v212 = vsub.f32 1.0, %v211
    %v213 = vmul.f32 %v210, %v212
    %v214 = vadd.f32 %v210, %v213
    %vm215 = vweird.f32 %v208
    %vm216 = vweird.f32 %v210
    %vm217 = vmor %vm215, %vm216
    %v218 = vsel %vm217, %v210, %v214
    %v219 = vand.u32 2147483647, %v208
    %vm220 = vcmp.eq.f32.partialorder %v219, 8.507059e+37
    %v221 = vand.u32 %v208, 2147483648
    %v222 = vor.u32 1.1754944e-38, %v221
    %v223 = vsel %vm220, %v222, %v218
    %v224 = vmul.f32 1.0, %v223
    %v225 = vrcp.pop %v209
    %v226 = vmul.f32 %v209, %v225
    %v227 = vsub.f32 1.0, %v226
    %v228 = vmul.f32 %v225, %v227
    %v229 = vadd.f32 %v225, %v228
    %vm230 = vweird.f32 %v209
    %vm231 = vweird.f32 %v225
    %vm232 = vmor %vm230, %vm231
    %v233 = vsel %vm232, %v225, %v229
    %v234 = vand.u32 2147483647, %v209
    %vm235 = vcmp.eq.f32.partialorder %v234, 8.507059e+37
    %v236 = vand.u32 %v209, 2147483648
    %v237 = vor.u32 1.1754944e-38, %v236
    %v238 = vsel %vm235, %v237, %v233
    %v239 = vmul.f32 1.0, %v238
    %v240 = vtanh.pop %v201
    %v241 = vmul.f32 %v224, 0.0
    %v242 = vmul.f32 %v224, %v240
    %244 = vrot.lane.b32.xlu0 %v242, 64
    %v245 = vpop.permute.xlu0 %244
    %v247 = vadd.f32 %v241, %v245
    %v248 = vtanh.pop %v247
    %v249 = vmul.f32 %v239, %v248
    %251 = vrot.lane.b32.xlu0 %v249, 64
    %v252 = vpop.permute.xlu0 %251
    %v253 = vsel %vm156, %v252, 0
    %255 = vmatpush.msra.mxu0 0.0
    %256 = vmatpush.msra.mxu0 0.0
    %257 = vmatpush.msra.mxu0 0.0
    %258 = vmatpush.msra.mxu0 0.0
    %259 = vmatpush.msra.mxu0 0.0
    %260 = vmatpush.msra.mxu0 0.0
    %261 = vmatpush.msra.mxu0 0.0
    %262 = vmatpush.msra.mxu0 0.0
    %263 = vmatpush.msra.mxu0 %v154
    %264 = vmatpush.msra.mxu0 %v152
    %265 = vmatpush.msra.mxu0 %v150
    %266 = vmatpush.msra.mxu0 %v148
    %267 = vmatpush.msra.mxu0 %v146
    %268 = vmatpush.msra.mxu0 %v144
    %269 = vmatpush.msra.mxu0 %v142
    %270 = vmatpush.msra.mxu0 %v140
    %271 = vmatmul.f32.gmra.mxu0 %v253
    %v272 = vpop.f32.mrf.mxu0
    %v273 = vadd.f32 0.0, %v272
    %274 = vdwg.mxu0
    %275 = vmatpush.msra.mxu0 0.0
    %276 = vmatpush.msra.mxu0 0.0
    %277 = vmatpush.msra.mxu0 0.0
    %278 = vmatpush.msra.mxu0 0.0
    %279 = vmatpush.msra.mxu0 0.0
    %280 = vmatpush.msra.mxu0 0.0
    %281 = vmatpush.msra.mxu0 0.0
    %282 = vmatpush.msra.mxu0 0.0
    %283 = vmatpush.msra.mxu0 %v155
    %284 = vmatpush.msra.mxu0 %v153
    %285 = vmatpush.msra.mxu0 %v151
    %286 = vmatpush.msra.mxu0 %v149
    %287 = vmatpush.msra.mxu0 %v147
    %288 = vmatpush.msra.mxu0 %v145
    %289 = vmatpush.msra.mxu0 %v143
    %290 = vmatpush.msra.mxu0 %v141
    %291 = vmatmul.f32.gmra.mxu0 %v253
    %v292 = vpop.f32.mrf.mxu0
    %v293 = vadd.f32 0.0, %v292
    %294 = vdwg.mxu0
    %v297 = vrot.slane %v273, 7
    %v298 = vrot.slane %v293, 7
    %v301 = vadd.f32 %v118, %v297
    %v302 = vadd.f32 %v138, %v298
    %v303 = vxor.u32 %v301, 2147483648
    %v304 = vxor.u32 %v302, 2147483648
    %v305 = vmul.f32 %v303, 1.442695
    %v306 = vpow.pop %v305
    %v307 = vmul.f32 %v304, 1.442695
    %v308 = vpow.pop %v307
    %v309 = vadd.f32 %v306, 1.0
    %v310 = vadd.f32 %v308, 1.0
    %v311 = vrcp.pop %v309
    %v312 = vmul.f32 %v309, %v311
    %v313 = vsub.f32 1.0, %v312
    %v314 = vmul.f32 %v311, %v313
    %v315 = vadd.f32 %v311, %v314
    %vm316 = vweird.f32 %v309
    %vm317 = vweird.f32 %v311
    %vm318 = vmor %vm316, %vm317
    %v319 = vsel %vm318, %v311, %v315
    %v320 = vand.u32 2147483647, %v309
    %vm321 = vcmp.eq.f32.partialorder %v320, 8.507059e+37
    %v322 = vand.u32 %v309, 2147483648
    %v323 = vor.u32 1.1754944e-38, %v322
    %v324 = vsel %vm321, %v323, %v319
    %v325 = vmul.f32 1.0, %v324
    %v326 = vrcp.pop %v310
    %v327 = vmul.f32 %v310, %v326
    %v328 = vsub.f32 1.0, %v327
    %v329 = vmul.f32 %v326, %v328
    %v330 = vadd.f32 %v326, %v329
    %vm331 = vweird.f32 %v310
    %vm332 = vweird.f32 %v326
    %vm333 = vmor %vm331, %vm332
    %v334 = vsel %vm333, %v326, %v330
    %v335 = vand.u32 2147483647, %v310
    %vm336 = vcmp.eq.f32.partialorder %v335, 8.507059e+37
    %v337 = vand.u32 %v310, 2147483648
    %v338 = vor.u32 1.1754944e-38, %v337
    %v339 = vsel %vm336, %v338, %v334
    %v340 = vmul.f32 1.0, %v339
    %v341 = vtanh.pop %v302
    %v343 = vrot.slane %v247, 7
    %v345 = vmul.f32 %v325, %v343
    %v346 = vmul.f32 %v325, %v341
    %348 = vrot.lane.b32.xlu0 %v346, 64
    %v349 = vpop.permute.xlu0 %348
    %v351 = vadd.f32 %v345, %v349
    %v352 = vtanh.pop %v351
    %v353 = vmul.f32 %v340, %v352
    %v355 = vrot.slane %v353, 1
    %356 = vrot.lane.b32.xlu0 %v355, 64
    %v357 = vpop.permute.xlu0 %356
    %v358 = vsel %vm156, %v357, 0
    %360 = vmatpush.msra.mxu0 0.0
    %361 = vmatpush.msra.mxu0 0.0
    %362 = vmatpush.msra.mxu0 0.0
    %363 = vmatpush.msra.mxu0 0.0
    %364 = vmatpush.msra.mxu0 0.0
    %365 = vmatpush.msra.mxu0 0.0
    %366 = vmatpush.msra.mxu0 0.0
    %367 = vmatpush.msra.mxu0 0.0
    %368 = vmatpush.msra.mxu0 %v154
    %369 = vmatpush.msra.mxu0 %v152
    %370 = vmatpush.msra.mxu0 %v150
    %371 = vmatpush.msra.mxu0 %v148
    %372 = vmatpush.msra.mxu0 %v146
    %373 = vmatpush.msra.mxu0 %v144
    %374 = vmatpush.msra.mxu0 %v142
    %375 = vmatpush.msra.mxu0 %v140
    %376 = vmatmul.f32.gmra.mxu0 %v358
    %v377 = vpop.f32.mrf.mxu0
    %v378 = vadd.f32 0.0, %v377
    %379 = vdwg.mxu0
    %380 = vmatpush.msra.mxu0 0.0
    %381 = vmatpush.msra.mxu0 0.0
    %382 = vmatpush.msra.mxu0 0.0
    %383 = vmatpush.msra.mxu0 0.0
    %384 = vmatpush.msra.mxu0 0.0
    %385 = vmatpush.msra.mxu0 0.0
    %386 = vmatpush.msra.mxu0 0.0
    %387 = vmatpush.msra.mxu0 0.0
    %388 = vmatpush.msra.mxu0 %v155
    %389 = vmatpush.msra.mxu0 %v153
    %390 = vmatpush.msra.mxu0 %v151
    %391 = vmatpush.msra.mxu0 %v149
    %392 = vmatpush.msra.mxu0 %v147
    %393 = vmatpush.msra.mxu0 %v145
    %394 = vmatpush.msra.mxu0 %v143
    %395 = vmatpush.msra.mxu0 %v141
    %396 = vmatmul.f32.gmra.mxu0 %v358
    %v397 = vpop.f32.mrf.mxu0
    %v398 = vadd.f32 0.0, %v397
    %399 = vdwg.mxu0
    %v402 = vrot.slane %v378, 6
    %v403 = vrot.slane %v398, 6
    %v406 = vadd.f32 %v118, %v402
    %v407 = vadd.f32 %v138, %v403
    %v408 = vxor.u32 %v406, 2147483648
    %v409 = vxor.u32 %v407, 2147483648
    %v410 = vmul.f32 %v408, 1.442695
    %v411 = vpow.pop %v410
    %v412 = vmul.f32 %v409, 1.442695
    %v413 = vpow.pop %v412
    %v414 = vadd.f32 %v411, 1.0
    %v415 = vadd.f32 %v413, 1.0
    %v416 = vrcp.pop %v414
    %v417 = vmul.f32 %v414, %v416
    %v418 = vsub.f32 1.0, %v417
    %v419 = vmul.f32 %v416, %v418
    %v420 = vadd.f32 %v416, %v419
    %vm421 = vweird.f32 %v414
    %vm422 = vweird.f32 %v416
    %vm423 = vmor %vm421, %vm422
    %v424 = vsel %vm423, %v416, %v420
    %v425 = vand.u32 2147483647, %v414
    %vm426 = vcmp.eq.f32.partialorder %v425, 8.507059e+37
    %v427 = vand.u32 %v414, 2147483648
    %v428 = vor.u32 1.1754944e-38, %v427
    %v429 = vsel %vm426, %v428, %v424
    %v430 = vmul.f32 1.0, %v429
    %v431 = vrcp.pop %v415
    %v432 = vmul.f32 %v415, %v431
    %v433 = vsub.f32 1.0, %v432
    %v434 = vmul.f32 %v431, %v433
    %v435 = vadd.f32 %v431, %v434
    %vm436 = vweird.f32 %v415
    %vm437 = vweird.f32 %v431
    %vm438 = vmor %vm436, %vm437
    %v439 = vsel %vm438, %v431, %v435
    %v440 = vand.u32 2147483647, %v415
    %vm441 = vcmp.eq.f32.partialorder %v440, 8.507059e+37
    %v442 = vand.u32 %v415, 2147483648
    %v443 = vor.u32 1.1754944e-38, %v442
    %v444 = vsel %vm441, %v443, %v439
    %v445 = vmul.f32 1.0, %v444
    %v446 = vtanh.pop %v407
    %v448 = vrot.slane %v351, 7
    %v450 = vmul.f32 %v430, %v448
    %v451 = vmul.f32 %v430, %v446
    %453 = vrot.lane.b32.xlu0 %v451, 64
    %v454 = vpop.permute.xlu0 %453
    %v456 = vadd.f32 %v450, %v454
    %v457 = vtanh.pop %v456
    %v458 = vmul.f32 %v445, %v457
    %v460 = vrot.slane %v458, 2
    %461 = vrot.lane.b32.xlu0 %v460, 64
    %v462 = vpop.permute.xlu0 %461
    %v463 = vsel %vm156, %v462, 0
    %465 = vmatpush.msra.mxu0 0.0
    %466 = vmatpush.msra.mxu0 0.0
    %467 = vmatpush.msra.mxu0 0.0
    %468 = vmatpush.msra.mxu0 0.0
    %469 = vmatpush.msra.mxu0 0.0
    %470 = vmatpush.msra.mxu0 0.0
    %471 = vmatpush.msra.mxu0 0.0
    %472 = vmatpush.msra.mxu0 0.0
    %473 = vmatpush.msra.mxu0 %v154
    %474 = vmatpush.msra.mxu0 %v152
    %475 = vmatpush.msra.mxu0 %v150
    %476 = vmatpush.msra.mxu0 %v148
    %477 = vmatpush.msra.mxu0 %v146
    %478 = vmatpush.msra.mxu0 %v144
    %479 = vmatpush.msra.mxu0 %v142
    %480 = vmatpush.msra.mxu0 %v140
    %481 = vmatmul.f32.gmra.mxu0 %v463
    %v482 = vpop.f32.mrf.mxu0
    %v483 = vadd.f32 0.0, %v482
    %484 = vdwg.mxu0
    %485 = vmatpush.msra.mxu0 0.0
    %486 = vmatpush.msra.mxu0 0.0
    %487 = vmatpush.msra.mxu0 0.0
    %488 = vmatpush.msra.mxu0 0.0
    %489 = vmatpush.msra.mxu0 0.0
    %490 = vmatpush.msra.mxu0 0.0
    %491 = vmatpush.msra.mxu0 0.0
    %492 = vmatpush.msra.mxu0 0.0
    %493 = vmatpush.msra.mxu0 %v155
    %494 = vmatpush.msra.mxu0 %v153
    %495 = vmatpush.msra.mxu0 %v151
    %496 = vmatpush.msra.mxu0 %v149
    %497 = vmatpush.msra.mxu0 %v147
    %498 = vmatpush.msra.mxu0 %v145
    %499 = vmatpush.msra.mxu0 %v143
    %500 = vmatpush.msra.mxu0 %v141
    %501 = vmatmul.f32.gmra.mxu0 %v463
    %v502 = vpop.f32.mrf.mxu0
    %v503 = vadd.f32 0.0, %v502
    %504 = vdwg.mxu0
    %v507 = vrot.slane %v483, 5
    %v508 = vrot.slane %v503, 5
    %v511 = vadd.f32 %v118, %v507
    %v512 = vadd.f32 %v138, %v508
    %v513 = vxor.u32 %v511, 2147483648
    %v514 = vxor.u32 %v512, 2147483648
    %v515 = vmul.f32 %v513, 1.442695
    %v516 = vpow.pop %v515
    %v517 = vmul.f32 %v514, 1.442695
    %v518 = vpow.pop %v517
    %v519 = vadd.f32 %v516, 1.0
    %v520 = vadd.f32 %v518, 1.0
    %v521 = vrcp.pop %v519
    %v522 = vmul.f32 %v519, %v521
    %v523 = vsub.f32 1.0, %v522
    %v524 = vmul.f32 %v521, %v523
    %v525 = vadd.f32 %v521, %v524
    %vm526 = vweird.f32 %v519
    %vm527 = vweird.f32 %v521
    %vm528 = vmor %vm526, %vm527
    %v529 = vsel %vm528, %v521, %v525
    %v530 = vand.u32 2147483647, %v519
    %vm531 = vcmp.eq.f32.partialorder %v530, 8.507059e+37
    %v532 = vand.u32 %v519, 2147483648
    %v533 = vor.u32 1.1754944e-38, %v532
    %v534 = vsel %vm531, %v533, %v529
    %v535 = vmul.f32 1.0, %v534
    %v536 = vrcp.pop %v520
    %v537 = vmul.f32 %v520, %v536
    %v538 = vsub.f32 1.0, %v537
    %v539 = vmul.f32 %v536, %v538
    %v540 = vadd.f32 %v536, %v539
    %vm541 = vweird.f32 %v520
    %vm542 = vweird.f32 %v536
    %vm543 = vmor %vm541, %vm542
    %v544 = vsel %vm543, %v536, %v540
    %v545 = vand.u32 2147483647, %v520
    %vm546 = vcmp.eq.f32.partialorder %v545, 8.507059e+37
    %v547 = vand.u32 %v520, 2147483648
    %v548 = vor.u32 1.1754944e-38, %v547
    %v549 = vsel %vm546, %v548, %v544
    %v550 = vmul.f32 1.0, %v549
    %v551 = vtanh.pop %v512
    %v553 = vrot.slane %v456, 7
    %v555 = vmul.f32 %v535, %v553
    %v556 = vmul.f32 %v535, %v551
    %558 = vrot.lane.b32.xlu0 %v556, 64
    %v559 = vpop.permute.xlu0 %558
    %v561 = vadd.f32 %v555, %v559
    %v562 = vtanh.pop %v561
    %v563 = vmul.f32 %v550, %v562
    %v565 = vrot.slane %v563, 3
    %566 = vrot.lane.b32.xlu0 %v565, 64
    %v567 = vpop.permute.xlu0 %566
    %v568 = vsel %vm156, %v567, 0
    %570 = vmatpush.msra.mxu0 0.0
    %571 = vmatpush.msra.mxu0 0.0
    %572 = vmatpush.msra.mxu0 0.0
    %573 = vmatpush.msra.mxu0 0.0
    %574 = vmatpush.msra.mxu0 0.0
    %575 = vmatpush.msra.mxu0 0.0
    %576 = vmatpush.msra.mxu0 0.0
    %577 = vmatpush.msra.mxu0 0.0
    %578 = vmatpush.msra.mxu0 %v154
    %579 = vmatpush.msra.mxu0 %v152
    %580 = vmatpush.msra.mxu0 %v150
    %581 = vmatpush.msra.mxu0 %v148
    %582 = vmatpush.msra.mxu0 %v146
    %583 = vmatpush.msra.mxu0 %v144
    %584 = vmatpush.msra.mxu0 %v142
    %585 = vmatpush.msra.mxu0 %v140
    %586 = vmatmul.f32.gmra.mxu0 %v568
    %v587 = vpop.f32.mrf.mxu0
    %v588 = vadd.f32 0.0, %v587
    %589 = vdwg.mxu0
    %590 = vmatpush.msra.mxu0 0.0
    %591 = vmatpush.msra.mxu0 0.0
    %592 = vmatpush.msra.mxu0 0.0
    %593 = vmatpush.msra.mxu0 0.0
    %594 = vmatpush.msra.mxu0 0.0
    %595 = vmatpush.msra.mxu0 0.0
    %596 = vmatpush.msra.mxu0 0.0
    %597 = vmatpush.msra.mxu0 0.0
    %598 = vmatpush.msra.mxu0 %v155
    %599 = vmatpush.msra.mxu0 %v153
    %600 = vmatpush.msra.mxu0 %v151
    %601 = vmatpush.msra.mxu0 %v149
    %602 = vmatpush.msra.mxu0 %v147
    %603 = vmatpush.msra.mxu0 %v145
    %604 = vmatpush.msra.mxu0 %v143
    %605 = vmatpush.msra.mxu0 %v141
    %606 = vmatmul.f32.gmra.mxu0 %v568
    %v607 = vpop.f32.mrf.mxu0
    %v608 = vadd.f32 0.0, %v607
    %609 = vdwg.mxu0
    %v612 = vrot.slane %v588, 4
    %v613 = vrot.slane %v608, 4
    %v616 = vadd.f32 %v118, %v612
    %v617 = vadd.f32 %v138, %v613
    %v618 = vxor.u32 %v616, 2147483648
    %v619 = vxor.u32 %v617, 2147483648
    %v620 = vmul.f32 %v618, 1.442695
    %v621 = vpow.pop %v620
    %v622 = vmul.f32 %v619, 1.442695
    %v623 = vpow.pop %v622
    %v624 = vadd.f32 %v621, 1.0
    %v625 = vadd.f32 %v623, 1.0
    %v626 = vrcp.pop %v624
    %v627 = vmul.f32 %v624, %v626
    %v628 = vsub.f32 1.0, %v627
    %v629 = vmul.f32 %v626, %v628
    %v630 = vadd.f32 %v626, %v629
    %vm631 = vweird.f32 %v624
    %vm632 = vweird.f32 %v626
    %vm633 = vmor %vm631, %vm632
    %v634 = vsel %vm633, %v626, %v630
    %v635 = vand.u32 2147483647, %v624
    %vm636 = vcmp.eq.f32.partialorder %v635, 8.507059e+37
    %v637 = vand.u32 %v624, 2147483648
    %v638 = vor.u32 1.1754944e-38, %v637
    %v639 = vsel %vm636, %v638, %v634
    %v640 = vmul.f32 1.0, %v639
    %v641 = vrcp.pop %v625
    %v642 = vmul.f32 %v625, %v641
    %v643 = vsub.f32 1.0, %v642
    %v644 = vmul.f32 %v641, %v643
    %v645 = vadd.f32 %v641, %v644
    %vm646 = vweird.f32 %v625
    %vm647 = vweird.f32 %v641
    %vm648 = vmor %vm646, %vm647
    %v649 = vsel %vm648, %v641, %v645
    %v650 = vand.u32 2147483647, %v625
    %vm651 = vcmp.eq.f32.partialorder %v650, 8.507059e+37
    %v652 = vand.u32 %v625, 2147483648
    %v653 = vor.u32 1.1754944e-38, %v652
    %v654 = vsel %vm651, %v653, %v649
    %v655 = vmul.f32 1.0, %v654
    %v656 = vtanh.pop %v617
    %v658 = vrot.slane %v561, 7
    %v660 = vmul.f32 %v640, %v658
    %v661 = vmul.f32 %v640, %v656
    %663 = vrot.lane.b32.xlu0 %v661, 64
    %v664 = vpop.permute.xlu0 %663
    %v666 = vadd.f32 %v660, %v664
    %v667 = vtanh.pop %v666
    %v668 = vmul.f32 %v655, %v667
    %v670 = vrot.slane %v668, 4
    %671 = vrot.lane.b32.xlu0 %v670, 64
    %v672 = vpop.permute.xlu0 %671
    %v673 = vsel %vm156, %v672, 0
    %675 = vmatpush.msra.mxu0 0.0
    %676 = vmatpush.msra.mxu0 0.0
    %677 = vmatpush.msra.mxu0 0.0
    %678 = vmatpush.msra.mxu0 0.0
    %679 = vmatpush.msra.mxu0 0.0
    %680 = vmatpush.msra.mxu0 0.0
    %681 = vmatpush.msra.mxu0 0.0
    %682 = vmatpush.msra.mxu0 0.0
    %683 = vmatpush.msra.mxu0 %v154
    %684 = vmatpush.msra.mxu0 %v152
    %685 = vmatpush.msra.mxu0 %v150
    %686 = vmatpush.msra.mxu0 %v148
    %687 = vmatpush.msra.mxu0 %v146
    %688 = vmatpush.msra.mxu0 %v144
    %689 = vmatpush.msra.mxu0 %v142
    %690 = vmatpush.msra.mxu0 %v140
    %691 = vmatmul.f32.gmra.mxu0 %v673
    %v692 = vpop.f32.mrf.mxu0
    %v693 = vadd.f32 0.0, %v692
    %694 = vdwg.mxu0
    %695 = vmatpush.msra.mxu0 0.0
    %696 = vmatpush.msra.mxu0 0.0
    %697 = vmatpush.msra.mxu0 0.0
    %698 = vmatpush.msra.mxu0 0.0
    %699 = vmatpush.msra.mxu0 0.0
    %700 = vmatpush.msra.mxu0 0.0
    %701 = vmatpush.msra.mxu0 0.0
    %702 = vmatpush.msra.mxu0 0.0
    %703 = vmatpush.msra.mxu0 %v155
    %704 = vmatpush.msra.mxu0 %v153
    %705 = vmatpush.msra.mxu0 %v151
    %706 = vmatpush.msra.mxu0 %v149
    %707 = vmatpush.msra.mxu0 %v147
    %708 = vmatpush.msra.mxu0 %v145
    %709 = vmatpush.msra.mxu0 %v143
    %710 = vmatpush.msra.mxu0 %v141
    %711 = vmatmul.f32.gmra.mxu0 %v673
    %v712 = vpop.f32.mrf.mxu0
    %v713 = vadd.f32 0.0, %v712
    %714 = vdwg.mxu0
    %v717 = vrot.slane %v693, 3
    %v718 = vrot.slane %v713, 3
    %v721 = vadd.f32 %v118, %v717
    %v722 = vadd.f32 %v138, %v718
    %v723 = vxor.u32 %v721, 2147483648
    %v724 = vxor.u32 %v722, 2147483648
    %v725 = vmul.f32 %v723, 1.442695
    %v726 = vpow.pop %v725
    %v727 = vmul.f32 %v724, 1.442695
    %v728 = vpow.pop %v727
    %v729 = vadd.f32 %v726, 1.0
    %v730 = vadd.f32 %v728, 1.0
    %v731 = vrcp.pop %v729
    %v732 = vmul.f32 %v729, %v731
    %v733 = vsub.f32 1.0, %v732
    %v734 = vmul.f32 %v731, %v733
    %v735 = vadd.f32 %v731, %v734
    %vm736 = vweird.f32 %v729
    %vm737 = vweird.f32 %v731
    %vm738 = vmor %vm736, %vm737
    %v739 = vsel %vm738, %v731, %v735
    %v740 = vand.u32 2147483647, %v729
    %vm741 = vcmp.eq.f32.partialorder %v740, 8.507059e+37
    %v742 = vand.u32 %v729, 2147483648
    %v743 = vor.u32 1.1754944e-38, %v742
    %v744 = vsel %vm741, %v743, %v739
    %v745 = vmul.f32 1.0, %v744
    %v746 = vrcp.pop %v730
    %v747 = vmul.f32 %v730, %v746
    %v748 = vsub.f32 1.0, %v747
    %v749 = vmul.f32 %v746, %v748
    %v750 = vadd.f32 %v746, %v749
    %vm751 = vweird.f32 %v730
    %vm752 = vweird.f32 %v746
    %vm753 = vmor %vm751, %vm752
    %v754 = vsel %vm753, %v746, %v750
    %v755 = vand.u32 2147483647, %v730
    %vm756 = vcmp.eq.f32.partialorder %v755, 8.507059e+37
    %v757 = vand.u32 %v730, 2147483648
    %v758 = vor.u32 1.1754944e-38, %v757
    %v759 = vsel %vm756, %v758, %v754
    %v760 = vmul.f32 1.0, %v759
    %v761 = vtanh.pop %v722
    %v763 = vrot.slane %v666, 7
    %v765 = vmul.f32 %v745, %v763
    %v766 = vmul.f32 %v745, %v761
    %768 = vrot.lane.b32.xlu0 %v766, 64
    %v769 = vpop.permute.xlu0 %768
    %v771 = vadd.f32 %v765, %v769
    %v772 = vtanh.pop %v771
    %v773 = vmul.f32 %v760, %v772
    %v775 = vrot.slane %v773, 5
    %776 = vrot.lane.b32.xlu0 %v775, 64
    %v777 = vpop.permute.xlu0 %776
    %v778 = vsel %vm156, %v777, 0
    %780 = vmatpush.msra.mxu0 0.0
    %781 = vmatpush.msra.mxu0 0.0
    %782 = vmatpush.msra.mxu0 0.0
    %783 = vmatpush.msra.mxu0 0.0
    %784 = vmatpush.msra.mxu0 0.0
    %785 = vmatpush.msra.mxu0 0.0
    %786 = vmatpush.msra.mxu0 0.0
    %787 = vmatpush.msra.mxu0 0.0
    %788 = vmatpush.msra.mxu0 %v154
    %789 = vmatpush.msra.mxu0 %v152
    %790 = vmatpush.msra.mxu0 %v150
    %791 = vmatpush.msra.mxu0 %v148
    %792 = vmatpush.msra.mxu0 %v146
    %793 = vmatpush.msra.mxu0 %v144
    %794 = vmatpush.msra.mxu0 %v142
    %795 = vmatpush.msra.mxu0 %v140
    %796 = vmatmul.f32.gmra.mxu0 %v778
    %v797 = vpop.f32.mrf.mxu0
    %v798 = vadd.f32 0.0, %v797
    %799 = vdwg.mxu0
    %800 = vmatpush.msra.mxu0 0.0
    %801 = vmatpush.msra.mxu0 0.0
    %802 = vmatpush.msra.mxu0 0.0
    %803 = vmatpush.msra.mxu0 0.0
    %804 = vmatpush.msra.mxu0 0.0
    %805 = vmatpush.msra.mxu0 0.0
    %806 = vmatpush.msra.mxu0 0.0
    %807 = vmatpush.msra.mxu0 0.0
    %808 = vmatpush.msra.mxu0 %v155
    %809 = vmatpush.msra.mxu0 %v153
    %810 = vmatpush.msra.mxu0 %v151
    %811 = vmatpush.msra.mxu0 %v149
    %812 = vmatpush.msra.mxu0 %v147
    %813 = vmatpush.msra.mxu0 %v145
    %814 = vmatpush.msra.mxu0 %v143
    %815 = vmatpush.msra.mxu0 %v141
    %816 = vmatmul.f32.gmra.mxu0 %v778
    %v817 = vpop.f32.mrf.mxu0
    %v818 = vadd.f32 0.0, %v817
    %819 = vdwg.mxu0
    %v822 = vrot.slane %v798, 2
    %v823 = vrot.slane %v818, 2
    %v826 = vadd.f32 %v118, %v822
    %v827 = vadd.f32 %v138, %v823
    %v828 = vxor.u32 %v826, 2147483648
    %v829 = vxor.u32 %v827, 2147483648
    %v830 = vmul.f32 %v828, 1.442695
    %v831 = vpow.pop %v830
    %v832 = vmul.f32 %v829, 1.442695
    %v833 = vpow.pop %v832
    %v834 = vadd.f32 %v831, 1.0
    %v835 = vadd.f32 %v833, 1.0
    %v836 = vrcp.pop %v834
    %v837 = vmul.f32 %v834, %v836
    %v838 = vsub.f32 1.0, %v837
    %v839 = vmul.f32 %v836, %v838
    %v840 = vadd.f32 %v836, %v839
    %vm841 = vweird.f32 %v834
    %vm842 = vweird.f32 %v836
    %vm843 = vmor %vm841, %vm842
    %v844 = vsel %vm843, %v836, %v840
    %v845 = vand.u32 2147483647, %v834
    %vm846 = vcmp.eq.f32.partialorder %v845, 8.507059e+37
    %v847 = vand.u32 %v834, 2147483648
    %v848 = vor.u32 1.1754944e-38, %v847
    %v849 = vsel %vm846, %v848, %v844
    %v850 = vmul.f32 1.0, %v849
    %v851 = vrcp.pop %v835
    %v852 = vmul.f32 %v835, %v851
    %v853 = vsub.f32 1.0, %v852
    %v854 = vmul.f32 %v851, %v853
    %v855 = vadd.f32 %v851, %v854
    %vm856 = vweird.f32 %v835
    %vm857 = vweird.f32 %v851
    %vm858 = vmor %vm856, %vm857
    %v859 = vsel %vm858, %v851, %v855
    %v860 = vand.u32 2147483647, %v835
    %vm861 = vcmp.eq.f32.partialorder %v860, 8.507059e+37
    %v862 = vand.u32 %v835, 2147483648
    %v863 = vor.u32 1.1754944e-38, %v862
    %v864 = vsel %vm861, %v863, %v859
    %v865 = vmul.f32 1.0, %v864
    %v866 = vtanh.pop %v827
    %v868 = vrot.slane %v771, 7
    %v870 = vmul.f32 %v850, %v868
    %v871 = vmul.f32 %v850, %v866
    %873 = vrot.lane.b32.xlu0 %v871, 64
    %v874 = vpop.permute.xlu0 %873
    %v876 = vadd.f32 %v870, %v874
    %v877 = vtanh.pop %v876
    %v878 = vmul.f32 %v865, %v877
    %v880 = vrot.slane %v878, 6
    %881 = vrot.lane.b32.xlu0 %v880, 64
    %v882 = vpop.permute.xlu0 %881
    %v883 = vsel %vm156, %v882, 0
    %885 = vmatpush.msra.mxu0 0.0
    %886 = vmatpush.msra.mxu0 0.0
    %887 = vmatpush.msra.mxu0 0.0
    %888 = vmatpush.msra.mxu0 0.0
    %889 = vmatpush.msra.mxu0 0.0
    %890 = vmatpush.msra.mxu0 0.0
    %891 = vmatpush.msra.mxu0 0.0
    %892 = vmatpush.msra.mxu0 0.0
    %893 = vmatpush.msra.mxu0 %v154
    %894 = vmatpush.msra.mxu0 %v152
    %895 = vmatpush.msra.mxu0 %v150
    %896 = vmatpush.msra.mxu0 %v148
    %897 = vmatpush.msra.mxu0 %v146
    %898 = vmatpush.msra.mxu0 %v144
    %899 = vmatpush.msra.mxu0 %v142
    %900 = vmatpush.msra.mxu0 %v140
    %901 = vmatmul.f32.gmra.mxu0 %v883
    %v902 = vpop.f32.mrf.mxu0
    %v903 = vadd.f32 0.0, %v902
    %904 = vdwg.mxu0
    %905 = vmatpush.msra.mxu0 0.0
    %906 = vmatpush.msra.mxu0 0.0
    %907 = vmatpush.msra.mxu0 0.0
    %908 = vmatpush.msra.mxu0 0.0
    %909 = vmatpush.msra.mxu0 0.0
    %910 = vmatpush.msra.mxu0 0.0
    %911 = vmatpush.msra.mxu0 0.0
    %912 = vmatpush.msra.mxu0 0.0
    %913 = vmatpush.msra.mxu0 %v155
    %914 = vmatpush.msra.mxu0 %v153
    %915 = vmatpush.msra.mxu0 %v151
    %916 = vmatpush.msra.mxu0 %v149
    %917 = vmatpush.msra.mxu0 %v147
    %918 = vmatpush.msra.mxu0 %v145
    %919 = vmatpush.msra.mxu0 %v143
    %920 = vmatpush.msra.mxu0 %v141
    %921 = vmatmul.f32.gmra.mxu0 %v883
    %v922 = vpop.f32.mrf.mxu0
    %v923 = vadd.f32 0.0, %v922
    %924 = vdwg.mxu0
    %v927 = vrot.slane %v903, 1
    %v928 = vrot.slane %v923, 1
    %v931 = vadd.f32 %v118, %v927
    %v932 = vadd.f32 %v138, %v928
    %v933 = vxor.u32 %v931, 2147483648
    %v934 = vxor.u32 %v932, 2147483648
    %v935 = vmul.f32 %v933, 1.442695
    %v936 = vpow.pop %v935
    %v937 = vmul.f32 %v934, 1.442695
    %v938 = vpow.pop %v937
    %v939 = vadd.f32 %v936, 1.0
    %v940 = vadd.f32 %v938, 1.0
    %v941 = vrcp.pop %v939
    %v942 = vmul.f32 %v939, %v941
    %v943 = vsub.f32 1.0, %v942
    %v944 = vmul.f32 %v941, %v943
    %v945 = vadd.f32 %v941, %v944
    %vm946 = vweird.f32 %v939
    %vm947 = vweird.f32 %v941
    %vm948 = vmor %vm946, %vm947
    %v949 = vsel %vm948, %v941, %v945
    %v950 = vand.u32 2147483647, %v939
    %vm951 = vcmp.eq.f32.partialorder %v950, 8.507059e+37
    %v952 = vand.u32 %v939, 2147483648
    %v953 = vor.u32 1.1754944e-38, %v952
    %v954 = vsel %vm951, %v953, %v949
    %v955 = vmul.f32 1.0, %v954
    %v956 = vrcp.pop %v940
    %v957 = vmul.f32 %v940, %v956
    %v958 = vsub.f32 1.0, %v957
    %v959 = vmul.f32 %v956, %v958
    %v960 = vadd.f32 %v956, %v959
    %vm961 = vweird.f32 %v940
    %vm962 = vweird.f32 %v956
    %vm963 = vmor %vm961, %vm962
    %v964 = vsel %vm963, %v956, %v960
    %v965 = vand.u32 2147483647, %v940
    %vm966 = vcmp.eq.f32.partialorder %v965, 8.507059e+37
    %v967 = vand.u32 %v940, 2147483648
    %v968 = vor.u32 1.1754944e-38, %v967
    %v969 = vsel %vm966, %v968, %v964
    %v970 = vmul.f32 1.0, %v969
    %v971 = vtanh.pop %v932
    %v973 = vrot.slane %v876, 7
    %v975 = vmul.f32 %v955, %v973
    %v976 = vmul.f32 %v955, %v971
    %978 = vrot.lane.b32.xlu0 %v976, 64
    %v979 = vpop.permute.xlu0 %978
    %v981 = vadd.f32 %v975, %v979
    %v982 = vtanh.pop %v981
    %v983 = vmul.f32 %v970, %v982
    %v984 = vtanh.pop %v983
    %v985 = vld [vmem:[#allocation8] sm:$0xff]
    %v986 = vld [vmem:[#allocation8 + $0x8] sm:$0xff]
    %v987 = vld [vmem:[#allocation8 + $0x10] sm:$0xff]
    %v988 = vld [vmem:[#allocation8 + $0x18] sm:$0xff]
    %v989 = vld [vmem:[#allocation8 + $0x20] sm:$0xff]
    %v990 = vld [vmem:[#allocation8 + $0x28] sm:$0xff]
    %v991 = vld [vmem:[#allocation8 + $0x30] sm:$0xff]
    %v992 = vld [vmem:[#allocation8 + $0x38] sm:$0xff]
    %v993 = vld [vmem:[%s5] sm:$0x1]
    %v995 = vrot.slane %v984, 7
    %996 = vrot.lane.b32.xlu0 %v995, 64
    %v997 = vpop.permute.xlu0 %996
    %v998 = vsel %vm156, %v997, 0
    %1000 = vmatpush.msra.mxu0 0.0
    %1001 = vmatpush.msra.mxu0 0.0
    %1002 = vmatpush.msra.mxu0 0.0
    %1003 = vmatpush.msra.mxu0 0.0
    %1004 = vmatpush.msra.mxu0 0.0
    %1005 = vmatpush.msra.mxu0 0.0
    %1006 = vmatpush.msra.mxu0 0.0
    %1007 = vmatpush.msra.mxu0 0.0
    %1008 = vmatpush.msra.mxu0 %v992
    %1009 = vmatpush.msra.mxu0 %v991
    %1010 = vmatpush.msra.mxu0 %v990
    %1011 = vmatpush.msra.mxu0 %v989
    %1012 = vmatpush.msra.mxu0 %v988
    %1013 = vmatpush.msra.mxu0 %v987
    %1014 = vmatpush.msra.mxu0 %v986
    %1015 = vmatpush.msra.mxu0 %v985
    %1016 = vmatmul.f32.gmra.mxu0 %v998
    %v1017 = vpop.f32.mrf.mxu0
    %v1018 = vadd.f32 %v993, %v1017
    %1019 = vdwg.mxu0
    %1020 = vst [vmem:[#allocation10] sm:$0x1] %v1018
    // Predicated region
    $region42: #{tpu_custom_call.1} parent=1 // pred_check
      _
    $region43: #{tpu_custom_call.1} parent=1 // pred_check_branch
      %1022 = sbr.rel (0) target = $region45
    $region44: #{tpu_custom_call.1} parent=1 // pred_region
      %1024 = vsyncadd [#allocation4], 0
      %s1026 = sshll.u32 [#allocation10], 4
      %s1027 = int_to_ptr.vmem [resolvable:$true] %s1026
      %s1028 = sshll.u32 %s6, 4
      %s1029 = int_to_ptr.hbm [resolvable:$true] %s1028
      %1031 = dma.vmem_to_hbm [thread:$0]  %s1027, 16, %s1029, [#allocation4]
    $region45: #{tpu_custom_call.1} parent=1 // pred_fallthru
      _
    // Predicated region
    $region46: #{tpu_custom_call.1} parent=1 // pred_check
      _
    $region47: #{tpu_custom_call.1} parent=1 // pred_check_branch
      %1033 = sbr.rel (0) target = $region49
    $region48: #{tpu_custom_call.1} parent=1 // pred_region
      %1035 = dma.done [#allocation4], 16
    $region49: #{tpu_custom_call.1} parent=1 // pred_fallthru
      _
    %1036 = vsyncpa [#allocation3], 1
    %1037 = vsyncpa [#allocation6], 1
    %1038 = vsyncpa [#allocation9], 1
    %1039 = vsyncpa [#allocation4], 1

</llo_original>
